<compile_context>
chip_gen: v6e
topology: v6e:2x2x1
jax: 0.10.0
libtpu: 0.0.40
codegen_flags: <defaults>
</compile_context>

<pallas_src>
import functools
import math

import jax
import jax.numpy as jnp
from jax.experimental import pallas as pl
from jax.experimental.pallas import tpu as pltpu


_HALF_LOG_2PI = 0.5 * math.log(2.0 * math.pi)


def _elementwise_loss(x, t, *, log_input, full, eps):
    """Per-element Poisson NLL in f32. Pure jnp: usable in-kernel and in XLA."""
    if log_input:
        loss = jnp.exp(x) - t * x
    else:
        loss = x - t * jnp.log(x + eps)
    if full:
        # Folded Stirling: t*log(t) - t + 0.5*log(2*pi*t)
        #                = (t + 0.5)*log(t) - t + 0.5*log(2*pi)
        safe_t = jnp.where(t > 1.0, t, 1.0)
        stirling = (t + 0.5) * jnp.log(safe_t) - t + _HALF_LOG_2PI
        loss = loss + jnp.where(t > 1.0, stirling, jnp.zeros_like(loss))
    return loss


# ----------------------------------------------------------------------------
# Kernels
# ----------------------------------------------------------------------------

def _poisson_nll_reduce_kernel(x_ref, t_ref, out_ref, acc_ref, *,
                               log_input, full, eps, block_rows, lanes):
    i = pl.program_id(1)                     # reduction steps ("arbitrary")

    @pl.when(i == 0)
    def _():
        acc_ref[...] = jnp.zeros_like(acc_ref)

    x = x_ref[...].astype(jnp.float32)
    t = t_ref[...].astype(jnp.float32)
    loss = _elementwise_loss(x, t, log_input=log_input, full=full, eps=eps)

    # Vreg-shaped accumulation: collapse sublane groups with cheap VPU adds;
    # the final cross-lane reduction to a scalar happens once, in the wrapper.
    # No validity mask here: the kernel only ever sees aligned (or analytically
    # corrected) data, so this loop is pure streaming work.
    acc_ref[...] += loss.reshape(block_rows // 8, 8, lanes).sum(axis=0)

    @pl.when(i == pl.num_programs(1) - 1)
    def _():
        out_ref[0] = acc_ref[...]


def _poisson_nll_elementwise_kernel(x_ref, t_ref, out_ref, *,
                                    log_input, full, eps):
    x = x_ref[...].astype(jnp.float32)
    t = t_ref[...].astype(jnp.float32)
    loss = _elementwise_loss(x, t, log_input=log_input, full=full, eps=eps)
    out_ref[...] = loss.astype(out_ref.dtype)


# ----------------------------------------------------------------------------
# Device / tiling plan
# ----------------------------------------------------------------------------

@functools.lru_cache(maxsize=None)
def _tpu_device_kind():
    try:
        dev = jax.devices()[0]
        if dev.platform != "tpu":
            return ""
        return (dev.device_kind or "").lower()
    except Exception:
        return ""


def _is_two_core_chip():
    """v7x packs 2 TensorCores per JAX device; v5e/v6e expose 1."""
    kind = _tpu_device_kind()
    return any(tag in kind for tag in ("v7", "tpu7", "7x"))


def _tile_plan(total, itemsize, want_split, budget_bytes):
    """Lane-dense tiling plan for a flat tensor of `total` elements.

    Returns dict with: lanes, block_rows, n_splits, grid_inner, prefix, pad.
    `prefix` elements are processed by the Pallas kernel; `total - prefix`
    (when pad == 0) is a small tail handled in XLA; `pad > 0` only for tensors
    smaller than one minimal block.
    """
    total = max(int(total), 1)
    lanes = 512 if total >= (1 << 18) else 128          # multiple of 128
    sub = {4: 8, 2: 16, 1: 32}.get(int(itemsize), 8)    # sublane multiple

    rows = total // lanes
    if rows < sub:
        # Tiny tensor: one minimal zero-padded block (copy cost negligible).
        return dict(lanes=lanes, block_rows=sub, n_splits=1, grid_inner=1,
                    prefix=sub * lanes, pad=sub * lanes - total)

    # Block size: equal HBM bytes per block regardless of dtype, capped so the
    # in-kernel f32 intermediates stay comfortably inside VMEM, and capped to
    # ~rows/8 so (a) the pipeline has several steps and (b) any unaligned tail
    # handled in XLA stays a small fraction of the tensor.
    max_rows_bytes = budget_bytes // (itemsize * lanes)
    max_rows_elems = (1 << 20) // lanes                  # <= 1M elems per block
    max_rows = max(sub, (min(max_rows_bytes, max_rows_elems) // sub) * sub)
    block_rows = min(max_rows, max(sub, ((rows // 8) // sub) * sub))

    steps = rows // block_rows                           # >= 1
    if want_split and steps >= 2 and steps % 2 == 0:
        n_splits, grid_inner = 2, steps // 2
    else:
        n_splits, grid_inner = 1, steps

    prefix = steps * block_rows * lanes
    return dict(lanes=lanes, block_rows=block_rows, n_splits=n_splits,
                grid_inner=grid_inner, prefix=prefix, pad=0)


# ----------------------------------------------------------------------------
# Wrapper
# ----------------------------------------------------------------------------

def poisson_nll_loss(log_input_arr, target, *, log_input=True, full=False,
                     size_average=True, eps=1e-8, reduce=True):
    orig_shape = log_input_arr.shape
    orig_dtype = log_input_arr.dtype
    total = int(log_input_arr.size)
    itemsize = min(jnp.dtype(log_input_arr.dtype).itemsize,
                   jnp.dtype(target.dtype).itemsize)

    two_core = _is_two_core_chip()
    budget_bytes = (4 << 20) if two_core else (2 << 20)   # per-input block bytes
    vmem_limit = (40 << 20) if two_core else (32 << 20)
    # Split the reduction across the two TensorCores only where they exist.
    # TODO(synk): verify on v7x that "parallel" actually shards this axis across
    # both TensorCores; if a single TC runs all steps, switch the leading axis
    # to pltpu.CORE_PARALLEL (or an explicit core_map split).
    want_split = reduce and two_core

    plan = _tile_plan(total, itemsize, want_split, budget_bytes)
    lanes, block_rows = plan["lanes"], plan["block_rows"]
    n_splits, grid_inner = plan["n_splits"], plan["grid_inner"]
    prefix, pad = plan["prefix"], plan["pad"]
    tail = total - prefix if pad == 0 else 0

    x_flat = jnp.ravel(log_input_arr)
    t_flat = jnp.ravel(target)

    if pad:
        # Tiny tensors only: pad up to one minimal block (negligible copy).
        x_main = jnp.pad(x_flat, (0, pad))
        t_main = jnp.pad(t_flat, (0, pad))
    elif tail:
        # Aligned prefix through the kernel; small tail handled in XLA below.
        x_main = x_flat[:prefix]
        t_main = t_flat[:prefix]
    else:
        # Exactly tiled: pure (free) reshape, zero copies.
        x_main, t_main = x_flat, t_flat

    prefix_rows = prefix // lanes
    x2 = x_main.reshape(prefix_rows, lanes)
    t2 = t_main.reshape(prefix_rows, lanes)

    if reduce:
        kern = functools.partial(
            _poisson_nll_reduce_kernel, log_input=log_input, full=full,
            eps=eps, block_rows=block_rows, lanes=lanes)
        in_spec = pl.BlockSpec((block_rows, lanes),
                               lambda c, i: (c * grid_inner + i, 0))
        partials = pl.pallas_call(
            kern,
            out_shape=jax.ShapeDtypeStruct((n_splits, 8, lanes), jnp.float32),
            grid_spec=pltpu.PrefetchScalarGridSpec(
                num_scalar_prefetch=0,
                grid=(n_splits, grid_inner),
                in_specs=[in_spec, in_spec],
                out_specs=pl.BlockSpec((1, 8, lanes), lambda c, i: (c, 0, 0)),
                scratch_shapes=[pltpu.VMEM((8, lanes), jnp.float32)]),
            compiler_params=pltpu.CompilerParams(
                dimension_semantics=("parallel", "arbitrary"),
                vmem_limit_bytes=vmem_limit),
        )(x2, t2)
        s = jnp.sum(partials)                 # tiny final cross-lane reduce

        if pad and log_input:
            # Each zero-pad element contributes exp(0) - 0*0 = 1; the Stirling
            # term is gated on t > 1 so it adds nothing at t == 0.
            s = s - jnp.float32(pad)
        if tail:
            xt = x_flat[prefix:].astype(jnp.float32)
            tt = t_flat[prefix:].astype(jnp.float32)
            s = s + jnp.sum(_elementwise_loss(
                xt, tt, log_input=log_input, full=full, eps=eps))
        if size_average:
            s = s / jnp.float32(total)
        return s.astype(orig_dtype)

    # reduce=False: elementwise loss tensor.
    kern = functools.partial(
        _poisson_nll_elementwise_kernel, log_input=log_input, full=full,
        eps=eps)
    spec = pl.BlockSpec((block_rows, lanes), lambda i: (i, 0))
    out = pl.pallas_call(
        kern,
        out_shape=jax.ShapeDtypeStruct((prefix_rows, lanes), orig_dtype),
        grid_spec=pltpu.PrefetchScalarGridSpec(
            num_scalar_prefetch=0,
            grid=(prefix_rows // block_rows,),
            in_specs=[spec, spec],
            out_specs=spec),
        compiler_params=pltpu.CompilerParams(
            dimension_semantics=("parallel",),
            vmem_limit_bytes=vmem_limit),
    )(x2, t2)

    out_flat = out.reshape(-1)
    if pad:
        out_flat = out_flat[:total]
    elif tail:
        xt = x_flat[prefix:].astype(jnp.float32)
        tt = t_flat[prefix:].astype(jnp.float32)
        tail_loss = _elementwise_loss(
            xt, tt, log_input=log_input, full=full, eps=eps).astype(orig_dtype)
        out_flat = jnp.concatenate([out_flat, tail_loss])
    return out_flat.reshape(orig_shape)


class PoissonNLLLoss:
    """JAX/Pallas port of torch.nn.PoissonNLLLoss (forward only)."""

    def __init__(self, log_input=True, full=False, size_average=True,
                 eps=1e-8, reduce=True):
        self.log_input = log_input
        self.full = full
        self.size_average = size_average
        self.eps = eps
        self.reduce = reduce

    def __call__(self, log_input, target):
        return poisson_nll_loss(
            log_input, target, log_input=self.log_input, full=self.full,
            size_average=self.size_average, eps=self.eps, reduce=self.reduce)


def _reference(x, t, *, log_input, full, eps, size_average, reduce):
    x = x.astype(jnp.float32)
    t = t.astype(jnp.float32)
    loss = _elementwise_loss(x, t, log_input=log_input, full=full, eps=eps)
    if not reduce:
        return loss
    return jnp.mean(loss) if size_average else jnp.sum(loss)


if __name__ == "__main__":
    key = jax.random.PRNGKey(0)
    k1, k2 = jax.random.split(key)

    # Small NCHW-like shape; the loss itself is shape-agnostic (elementwise).
    shape = (2, 4, 16, 16)
    x = jax.random.normal(k1, shape, dtype=jnp.float32)
    target = jnp.abs(jax.random.normal(k2, shape, dtype=jnp.float32)) * 2.0

    # Default config: log_input=True, full=False, size_average=True, reduce=True.
    out = jax.block_until_ready(PoissonNLLLoss()(x, target))
    ref = _reference(x, target, log_input=True, full=False, eps=1e-8,
                     size_average=True, reduce=True)
    assert jnp.allclose(out, ref, rtol=1e-5, atol=1e-5), (out, ref)

    # Sum reduction.
    out_s = jax.block_until_ready(PoissonNLLLoss(size_average=False)(x, target))
    ref_s = _reference(x, target, log_input=True, full=False, eps=1e-8,
                       size_average=False, reduce=True)
    assert jnp.allclose(out_s, ref_s, rtol=1e-5, atol=1e-4), (out_s, ref_s)

    # Elementwise (reduce=False) path with full=True, log_input=False.
    x_pos = jnp.abs(x) + 0.5
    out_e = jax.block_until_ready(
        PoissonNLLLoss(log_input=False, full=True, reduce=False)(x_pos, target))
    ref_e = _reference(x_pos, target, log_input=False, full=True, eps=1e-8,
                       size_average=True, reduce=False)
    assert out_e.shape == shape
    assert jnp.allclose(out_e, ref_e, rtol=1e-5, atol=1e-5)

    # bf16 inputs stay bf16 on the load path; accumulation is f32 in-kernel.
    xb = x.astype(jnp.bfloat16)
    tb = target.astype(jnp.bfloat16)
    out_b = jax.block_until_ready(PoissonNLLLoss()(xb, tb))
    ref_b = _reference(xb.astype(jnp.float32), tb.astype(jnp.float32),
                       log_input=True, full=False, eps=1e-8,
                       size_average=True, reduce=True)
    assert jnp.allclose(out_b.astype(jnp.float32), ref_b, rtol=3e-2, atol=3e-2)

    print("KERNEL_OK")
</pallas_src>

<mosaic_0001>
module attributes {stable_mosaic.version = 11 : i64} {
  func.func @_poisson_nll_reduce_kernel(%arg0: i32, %arg1: i32, %arg2: memref<8x128xf32, #tpu.memory_space<vmem>>, %arg3: memref<8x128xf32, #tpu.memory_space<vmem>>, %arg4: memref<1x8x128xf32, #tpu.memory_space<vmem>>, %arg5: memref<8x128xf32, #tpu.memory_space<vmem>>) attributes {dimension_semantics = [#tpu.dimension_semantics<parallel>, #tpu.dimension_semantics<arbitrary>], iteration_bounds = array<i64: 1, 2>, scalar_prefetch = 0 : i64, scratch_operands = 1 : i64, tpu.core_type = #tpu.core_type<tc>, window_params = [{transform_indices = @transform_0, window_bounds = array<i64: 8, 128>}, {transform_indices = @transform_1, window_bounds = array<i64: 8, 128>}, {transform_indices = @transform_2, window_bounds = array<i64: 1, 8, 128>}]} {
    %c0_i32 = arith.constant 0 : i32
    %0 = arith.cmpi eq, %arg1, %c0_i32 : i32
    %1 = arith.extui %0 : i1 to i32
    %c0_i32_0 = arith.constant 0 : i32
    %2 = arith.cmpi ne, %1, %c0_i32_0 : i32
    scf.if %2 {
      %cst_9 = arith.constant 0.000000e+00 : f32
      %16 = vector.broadcast %cst_9 : f32 to vector<8x128xf32>
      %c0_10 = arith.constant 0 : index
      %c0_11 = arith.constant 0 : index
      %17 = vector.load %arg5[%c0_10, %c0_11] : memref<8x128xf32, #tpu.memory_space<vmem>>, vector<8x128xf32>
      tpu.vector_store %arg5[%c0_10, %c0_11], %16 {strides = array<i32>} : memref<8x128xf32, #tpu.memory_space<vmem>>, vector<8x128xf32>,
    } else {
    }
    %c0 = arith.constant 0 : index
    %c0_1 = arith.constant 0 : index
    %3 = vector.load %arg2[%c0, %c0_1] : memref<8x128xf32, #tpu.memory_space<vmem>>, vector<8x128xf32>
    %c0_2 = arith.constant 0 : index
    %c0_3 = arith.constant 0 : index
    %4 = vector.load %arg3[%c0_2, %c0_3] : memref<8x128xf32, #tpu.memory_space<vmem>>, vector<8x128xf32>
    %5 = math.exp %3 : vector<8x128xf32>
    %6 = arith.mulf %4, %3 : vector<8x128xf32>
    %7 = arith.subf %5, %6 : vector<8x128xf32>
    %c0_4 = arith.constant 0 : index
    %c0_5 = arith.constant 0 : index
    %8 = vector.load %arg5[%c0_4, %c0_5] : memref<8x128xf32, #tpu.memory_space<vmem>>, vector<8x128xf32>
    %9 = vector.shape_cast %7 : vector<8x128xf32> to vector<1x8x128xf32>
    %cst = arith.constant dense<0.000000e+00> : vector<8x128xf32>
    %10 = vector.multi_reduction <add>, %9, %cst [0] : vector<1x8x128xf32> to vector<8x128xf32>
    %11 = arith.addf %8, %10 : vector<8x128xf32>
    %c0_6 = arith.constant 0 : index
    %c0_7 = arith.constant 0 : index
    %12 = vector.load %arg5[%c0_6, %c0_7] : memref<8x128xf32, #tpu.memory_space<vmem>>, vector<8x128xf32>
    tpu.vector_store %arg5[%c0_6, %c0_7], %11 {strides = array<i32>} : memref<8x128xf32, #tpu.memory_space<vmem>>, vector<8x128xf32>,
    %c1_i32 = arith.constant 1 : i32
    %13 = arith.cmpi eq, %arg1, %c1_i32 : i32
    %14 = arith.extui %13 : i1 to i32
    %c0_i32_8 = arith.constant 0 : i32
    %15 = arith.cmpi ne, %14, %c0_i32_8 : i32
    scf.if %15 {
      %c0_9 = arith.constant 0 : index
      %c0_10 = arith.constant 0 : index
      %16 = vector.load %arg5[%c0_9, %c0_10] : memref<8x128xf32, #tpu.memory_space<vmem>>, vector<8x128xf32>
      %c0_11 = arith.constant 0 : index
      %c0_12 = arith.constant 0 : index
      %c0_13 = arith.constant 0 : index
      %17 = vector.load %arg4[%c0_11, %c0_12, %c0_13] : memref<1x8x128xf32, #tpu.memory_space<vmem>>, vector<1x8x128xf32>
      %18 = vector.shape_cast %17 : vector<1x8x128xf32> to vector<8x128xf32>
      %19 = vector.shape_cast %16 : vector<8x128xf32> to vector<1x8x128xf32>
      tpu.vector_store %arg4[%c0_11, %c0_12, %c0_13], %19 {strides = array<i32>} : memref<1x8x128xf32, #tpu.memory_space<vmem>>, vector<1x8x128xf32>,
    } else {
    }
    return
  }
  func.func @transform_0(%arg0: i32, %arg1: i32) -> (i32, i32) {
    %c2_i32 = arith.constant 2 : i32
    %0 = arith.muli %arg0, %c2_i32 : i32
    %1 = arith.addi %0, %arg1 : i32
    %c0_i32 = arith.constant 0 : i32
    %c0_i32_0 = arith.constant 0 : i32
    return %1, %c0_i32 : i32, i32
  }
  func.func @transform_1(%arg0: i32, %arg1: i32) -> (i32, i32) {
    %c2_i32 = arith.constant 2 : i32
    %0 = arith.muli %arg0, %c2_i32 : i32
    %1 = arith.addi %0, %arg1 : i32
    %c0_i32 = arith.constant 0 : i32
    %c0_i32_0 = arith.constant 0 : i32
    return %1, %c0_i32 : i32, i32
  }
  func.func @transform_2(%arg0: i32, %arg1: i32) -> (i32, i32, i32) {
    %c0_i32 = arith.constant 0 : i32
    %c0_i32_0 = arith.constant 0 : i32
    %c0_i32_1 = arith.constant 0 : i32
    return %arg0, %c0_i32, %c0_i32_0 : i32, i32, i32
  }
}

</mosaic_0001>

<llo_original>
// kernel: tpu_custom_call.1
$region0: #{tpu_custom_call.1}
  #allocation0 [shape = 'u32[]', space=smem, size = 0x4, offset = 0x4, fixed_abs, tag = 'smem constant byte address 0x4 - core index']
  #allocation1 [shape = 'u32[144,128]{1,0:T(1,128)}', space=vmem, size = 0x12000, scoped, tag = 'internal scratch']
  #allocation2 [shape = 'f32[8,128]{1,0:T(8,128)}', space=vmem, size = 0x1000, scoped, tag = 'scratch operand']
  %s0 = inlined_call_operand.hbm [shape: f32[16,128], index: 0, kind: input, shape index: {}]
  %s1 = inlined_call_operand.hbm [shape: f32[16,128], index: 1, kind: input, shape index: {}]
  %s2 = inlined_call_operand.hbm [shape: f32[1,8,128], index: 2, kind: output, shape index: {}]
  %s3 = sld [smem:[#allocation0]]
  $region57: #{tpu_custom_call.1} parent=0
    _
  %s5 = ssub.s32 1, %s3
  %s6 = scalar_select 0, %s5, %s3
  $region1: #{tpu_custom_call.1} parent=0
    #allocation3 [shape = 'u8[8192]{0}', space=vmem, size = 0x2000, scoped, tag = 'input window, operand 0']
    #allocation4 [shape = 's32[2]{0}', space=sflag, size = 0x8, scoped, tag = 'scoped memory for tpu_custom_call.1']
    #allocation5 [shape = 's32[2]{0}', space=sflag, size = 0x8, scoped, tag = 'scoped memory for tpu_custom_call.1']
    #allocation6 [shape = 'u8[8192]{0}', space=vmem, size = 0x2000, scoped, tag = 'input window, operand 1']
    #allocation7 [shape = 's32[2]{0}', space=sflag, size = 0x8, scoped, tag = 'scoped memory for tpu_custom_call.1']
    #allocation8 [shape = 'u8[4096]{0}', space=vmem, size = 0x1000, scoped, tag = 'output window, operand 0, single buffered']
    %7 = vsyncpa [#allocation4], 0
    %s8 = scalar_lea.sflag [#allocation4], 1
    %9 = vsyncpa %s8, 0
    %10 = vsyncpa [#allocation7], 0
    %s11 = scalar_lea.sflag [#allocation7], 1
    %12 = vsyncpa %s11, 0
    %13 = vsyncpa [#allocation5], 0
    loop: start=0, step=1, limit=4
    $region2: #{tpu_custom_call.1} parent=1 // loop_pre_header
      _
    $region3: #{tpu_custom_call.1} parent=1 // loop_header
      %s15 = sphi 0, %s19
      %p16 = scmp.ge.s32.totalorder %s15, 4
      %s22 = sphi 0, %s34
      %s23 = sphi 0, %s30
      %s24 = sphi 0, %s22
      %s25 = sphi 0, %s23
      %s26 = sphi 0, %s24
      %s27 = sphi 0, %s25
      %s41 = sphi 0, %s43
      %s44 = sphi 0, %s41
      %s45 = sphi 0, %s44
      %s61 = sphi 0, %s45
      %s71 = sphi 0, %s73
      %s74 = sphi 0, %s71
      %s75 = sphi 0, %s74
      %s91 = sphi 0, %s75
      %s97 = sphi 0, %s99
      %s100 = sphi 0, %s97
      %s101 = sphi 0, %s100
      %s117 = sphi 0, %s101
    $region4: #{tpu_custom_call.1} parent=1 // loop_header_branch
      %18 = sbr.rel (%p16) target = $region8
    $region5: #{tpu_custom_call.1} parent=1 // loop_body
      %s20 = ssub.s32 %s15, 1
      %s21 = ssub.s32 %s15, 2
      %s28 = sadd.s32 1, %s23
      %p29 = scmp.ge.s32.totalorder %s28, 2
      %s30 = scalar_select %p29, 0, %s28
      %s31 = sadd.s32 1, %s22
      %s32 = scalar_select %p29, %s31, %s22
      %p33 = scmp.ge.s32.totalorder %s32, 1
      %s34 = scalar_select %p33, 0, %s32
      %s35 = smul.u32 %s22, 2
      %s36 = sadd.s32 %s35, %s23
      %s37 = smul.u32 %s34, 2
      %s38 = sadd.s32 %s37, %s30
      %s39 = ssub.s32 %s36, %s38
      %p40 = scmp.eq.s32.totalorder %s39, 0
      %s42 = sadd.s32 %s41, 1
      %s43 = scalar_select %p40, %s41, %s42
      %p46 = pneg %p40
      %p47 = scmp.eq.s32.totalorder %s15, 1
      %p48 = por %p46, %p47
      %p49 = scmp.ne.s32.totalorder %s41, %s44
      %p50 = scmp.eq.s32.totalorder %s15, 0
      %p51 = por %p49, %p50
      %p52 = scmp.ne.s32.totalorder %s41, %s44
      %p53 = scmp.eq.s32.totalorder %s20, 1
      %p54 = por %p52, %p53
      %p55 = scmp.ne.s32.totalorder %s44, %s45
      %p56 = scmp.eq.s32.totalorder %s20, 0
      %p57 = por %p55, %p56
      %p58 = scmp.ne.s32.totalorder %s44, %s45
      %p59 = scmp.eq.s32.totalorder %s21, 1
      %p60 = por %p58, %p59
      %p62 = scmp.ne.s32.totalorder %s45, %s61
      %p63 = scmp.eq.s32.totalorder %s21, 0
      %p64 = por %p62, %p63
      %s65 = smul.u32 %s22, 2
      %s66 = sadd.s32 %s65, %s23
      %s67 = smul.u32 %s34, 2
      %s68 = sadd.s32 %s67, %s30
      %s69 = ssub.s32 %s66, %s68
      %p70 = scmp.eq.s32.totalorder %s69, 0
      %s72 = sadd.s32 %s71, 1
      %s73 = scalar_select %p70, %s71, %s72
      %p76 = pneg %p70
      %p77 = scmp.eq.s32.totalorder %s15, 1
      %p78 = por %p76, %p77
      %p79 = scmp.ne.s32.totalorder %s71, %s74
      %p80 = scmp.eq.s32.totalorder %s15, 0
      %p81 = por %p79, %p80
      %p82 = scmp.ne.s32.totalorder %s71, %s74
      %p83 = scmp.eq.s32.totalorder %s20, 1
      %p84 = por %p82, %p83
      %p85 = scmp.ne.s32.totalorder %s74, %s75
      %p86 = scmp.eq.s32.totalorder %s20, 0
      %p87 = por %p85, %p86
      %p88 = scmp.ne.s32.totalorder %s74, %s75
      %p89 = scmp.eq.s32.totalorder %s21, 1
      %p90 = por %p88, %p89
      %p92 = scmp.ne.s32.totalorder %s75, %s91
      %p93 = scmp.eq.s32.totalorder %s21, 0
      %p94 = por %p92, %p93
      %s95 = ssub.s32 %s22, %s34
      %p96 = scmp.eq.s32.totalorder %s95, 0
      %s98 = sadd.s32 %s97, 1
      %s99 = scalar_select %p96, %s97, %s98
      %p102 = pneg %p96
      %p103 = scmp.eq.s32.totalorder %s15, 1
      %p104 = por %p102, %p103
      %p105 = scmp.ne.s32.totalorder %s97, %s100
      %p106 = scmp.eq.s32.totalorder %s15, 0
      %p107 = por %p105, %p106
      %p108 = scmp.ne.s32.totalorder %s97, %s100
      %p109 = scmp.eq.s32.totalorder %s20, 1
      %p110 = por %p108, %p109
      %p111 = scmp.ne.s32.totalorder %s100, %s101
      %p112 = scmp.eq.s32.totalorder %s20, 0
      %p113 = por %p111, %p112
      %p114 = scmp.ne.s32.totalorder %s100, %s101
      %p115 = scmp.eq.s32.totalorder %s21, 1
      %p116 = por %p114, %p115
      %p118 = scmp.ne.s32.totalorder %s101, %s117
      %p119 = scmp.eq.s32.totalorder %s21, 0
      %p120 = por %p118, %p119
      %p121 = scmp.le.s32.totalorder 1, %s15
      %p122 = scmp.lt.s32.totalorder %s15, 3
      %p123 = pnand %p121, %p122
      %p124 = pneg %p123
      // Predicated region
      $region9: #{tpu_custom_call.1} parent=5 // pred_check
        _
      $region10: #{tpu_custom_call.1} parent=5 // pred_check_branch
        %126 = sbr.rel (%p123) target = $region12
      $region11: #{tpu_custom_call.1} parent=5 // pred_region
        %s127 = ssub.s32 %s15, 1
      $region12: #{tpu_custom_call.1} parent=5 // pred_fallthru
        _
      %p128 = scmp.lt.s32.totalorder %s15, 2
      // Predicated region
      $region13: #{tpu_custom_call.1} parent=5 // pred_check
        %p129 = pneg %p128
      $region14: #{tpu_custom_call.1} parent=5 // pred_check_branch
        %131 = sbr.rel (%p129) target = $region16
      $region15: #{tpu_custom_call.1} parent=5 // pred_region
        // Predicated region
        $region17: #{tpu_custom_call.1} parent=15 // pred_check
          %p132 = pneg %p51
        $region18: #{tpu_custom_call.1} parent=15 // pred_check_branch
          %134 = sbr.rel (%p132) target = $region20
        $region19: #{tpu_custom_call.1} parent=15 // pred_region
          %s135 = sand.u32 %s41, 1
          %s136 = scalar_lea.sflag [#allocation4], %s135
          %s137 = sand.u32 %s41, 1
          %s138 = smul.addr %s137, 8
          %s139 = scalar_lea.vmem [#allocation3], %s138
          %s140 = smul.u32 %s22, 2
          %s141 = sadd.s32 %s140, %s23
          %s143 = ssub.s32 128, 128
          %144 = vsyncadd %s136, %s143
          %s145 = smul.addr %s141, 128
          %s146 = scalar_lea.hbm %s0, %s145
          %s148 = sshll.u32 %s139, 4
          %s149 = int_to_ptr.vmem [resolvable:$true] %s148
          %151 = dma.hbm_to_vmem [thread:$0]  %s146, 128, %s149, %s136
        $region20: #{tpu_custom_call.1} parent=15 // pred_fallthru
          _
        // Predicated region
        $region21: #{tpu_custom_call.1} parent=15 // pred_check
          %p152 = pneg %p81
        $region22: #{tpu_custom_call.1} parent=15 // pred_check_branch
          %154 = sbr.rel (%p152) target = $region24
        $region23: #{tpu_custom_call.1} parent=15 // pred_region
          %s155 = sand.u32 %s71, 1
          %s156 = scalar_lea.sflag [#allocation7], %s155
          %s157 = sand.u32 %s71, 1
          %s158 = smul.addr %s157, 8
          %s159 = scalar_lea.vmem [#allocation6], %s158
          %s160 = smul.u32 %s22, 2
          %s161 = sadd.s32 %s160, %s23
          %s163 = ssub.s32 128, 128
          %164 = vsyncadd %s156, %s163
          %s165 = smul.addr %s161, 128
          %s166 = scalar_lea.hbm %s1, %s165
          %s168 = sshll.u32 %s159, 4
          %s169 = int_to_ptr.vmem [resolvable:$true] %s168
          %171 = dma.hbm_to_vmem [thread:$0]  %s166, 128, %s169, %s156
        $region24: #{tpu_custom_call.1} parent=15 // pred_fallthru
          _
      $region16: #{tpu_custom_call.1} parent=5 // pred_fallthru
        _
      %p172 = scmp.le.s32.totalorder 1, %s15
      %p173 = scmp.lt.s32.totalorder %s15, 3
      %p174 = pnand %p172, %p173
      %p175 = pneg %p174
      // Predicated region
      $region25: #{tpu_custom_call.1} parent=5 // pred_check
        _
      $region26: #{tpu_custom_call.1} parent=5 // pred_check_branch
        %177 = sbr.rel (%p174) target = $region28
      $region27: #{tpu_custom_call.1} parent=5 // pred_region
        %s178 = ssub.s32 %s15, 1
        %s179 = sand.u32 %s44, 1
        %s180 = scalar_lea.sflag [#allocation4], %s179
        %s181 = sand.u32 %s44, 1
        %s182 = smul.addr %s181, 8
        %s183 = scalar_lea.vmem [#allocation3], %s182
        // Predicated region
        $region29: #{tpu_custom_call.1} parent=27 // pred_check
          %p184 = pneg %p57
        $region30: #{tpu_custom_call.1} parent=27 // pred_check_branch
          %186 = sbr.rel (%p184) target = $region32
        $region31: #{tpu_custom_call.1} parent=27 // pred_region
          %187 = dma.done %s180, 128
        $region32: #{tpu_custom_call.1} parent=27 // pred_fallthru
          _
        %s188 = sand.u32 %s74, 1
        %s189 = scalar_lea.sflag [#allocation7], %s188
        %s190 = sand.u32 %s74, 1
        %s191 = smul.addr %s190, 8
        %s192 = scalar_lea.vmem [#allocation6], %s191
        // Predicated region
        $region33: #{tpu_custom_call.1} parent=27 // pred_check
          %p193 = pneg %p87
        $region34: #{tpu_custom_call.1} parent=27 // pred_check_branch
          %195 = sbr.rel (%p193) target = $region36
        $region35: #{tpu_custom_call.1} parent=27 // pred_region
          %196 = dma.done %s189, 128
        $region36: #{tpu_custom_call.1} parent=27 // pred_fallthru
          _
        %s197 = sand.u32 %s44, 1
        %s198 = scalar_lea.sflag [#allocation4], %s197
        %s199 = sand.u32 %s44, 1
        %s200 = smul.addr %s199, 8
        %s201 = scalar_lea.vmem [#allocation3], %s200
        %p202 = pneg %p57
        %p203 = pneg %p54
        %s204 = sand.u32 %s74, 1
        %s205 = scalar_lea.sflag [#allocation7], %s204
        %s206 = sand.u32 %s74, 1
        %s207 = smul.addr %s206, 8
        %s208 = scalar_lea.vmem [#allocation6], %s207
        %p209 = pneg %p87
        %p210 = pneg %p84
        %p211 = pneg %p113
        %p212 = pneg %p110
        %s213 = smul.u32 %s24, 2
        %s214 = sadd.s32 %s213, %s25
        %s215 = smul.u32 %s24, 2
        %s216 = sadd.s32 %s215, %s25
        %p217 = scmp.eq.s32.totalorder %s25, 0
        // Predicated region
        $region37: #{tpu_custom_call.1} parent=27 // pred_check
          %p218 = pneg %p217
        $region38: #{tpu_custom_call.1} parent=27 // pred_check_branch
          %220 = sbr.rel (%p218) target = $region40
        $region39: #{tpu_custom_call.1} parent=27 // pred_region
          %221 = vst [vmem:[#allocation2] sm:$0xff] 0.0
        $region40: #{tpu_custom_call.1} parent=27 // pred_fallthru
          _
        %v222 = vld [vmem:[%s183] sm:$0xff]
        %v223 = vld [vmem:[%s192] sm:$0xff]
        %v224 = vmul.f32 %v222, 1.442695
        %v225 = vpow.pop %v224
        %v226 = vmul.f32 %v223, %v222
        %v227 = vsub.f32 %v225, %v226
        %v228 = vld [vmem:[#allocation2] sm:$0xff]
        %v229 = vadd.f32 %v227, 0.0
        %v230 = vadd.f32 %v228, %v229
        %231 = vst [vmem:[#allocation2] sm:$0xff] %v230
        %p232 = scmp.eq.s32.totalorder %s25, 1
        // Predicated region
        $region41: #{tpu_custom_call.1} parent=27 // pred_check
          %p233 = pneg %p232
        $region42: #{tpu_custom_call.1} parent=27 // pred_check_branch
          %235 = sbr.rel (%p233) target = $region44
        $region43: #{tpu_custom_call.1} parent=27 // pred_region
          %v236 = vld [vmem:[#allocation2] sm:$0xff]
          %237 = vst [vmem:[#allocation8] sm:$0xff] %v236
        $region44: #{tpu_custom_call.1} parent=27 // pred_fallthru
          _
        // Predicated region
        $region45: #{tpu_custom_call.1} parent=27 // pred_check
          %p238 = pneg %p110
        $region46: #{tpu_custom_call.1} parent=27 // pred_check_branch
          %240 = sbr.rel (%p238) target = $region48
        $region47: #{tpu_custom_call.1} parent=27 // pred_region
          %s242 = ssub.s32 128, 128
          %243 = vsyncadd [#allocation5], %s242
          %s244 = smul.addr %s24, 128
          %s245 = scalar_lea.hbm %s2, %s244
          %s247 = sshll.u32 [#allocation8], 4
          %s248 = int_to_ptr.vmem [resolvable:$true] %s247
          %250 = dma.vmem_to_hbm [thread:$0]  %s248, 128, %s245, [#allocation5]
        $region48: #{tpu_custom_call.1} parent=27 // pred_fallthru
          _
        // Predicated region
        $region49: #{tpu_custom_call.1} parent=27 // pred_check
          %p251 = pneg %p110
        $region50: #{tpu_custom_call.1} parent=27 // pred_check_branch
          %253 = sbr.rel (%p251) target = $region52
        $region51: #{tpu_custom_call.1} parent=27 // pred_region
          %254 = dma.done [#allocation5], 128
        $region52: #{tpu_custom_call.1} parent=27 // pred_fallthru
          _
      $region28: #{tpu_custom_call.1} parent=5 // pred_fallthru
        _
      %p255 = scmp.le.s32.totalorder 2, %s15
      // Predicated region
      $region53: #{tpu_custom_call.1} parent=5 // pred_check
        %p256 = pneg %p255
      $region54: #{tpu_custom_call.1} parent=5 // pred_check_branch
        %258 = sbr.rel (%p256) target = $region56
      $region55: #{tpu_custom_call.1} parent=5 // pred_region
        %s259 = ssub.s32 %s15, 2
      $region56: #{tpu_custom_call.1} parent=5 // pred_fallthru
        _
    $region6: #{tpu_custom_call.1} parent=1 // loop_footer
      %s19 = sadd.s32 1, %s15
    $region7: #{tpu_custom_call.1} parent=1 // loop_footer_branch
      %14 = sbr.rel target = $region3
    $region8: #{tpu_custom_call.1} parent=1 // loop_exit
      _
    %260 = vsyncpa [#allocation4], 1
    %s261 = scalar_lea.sflag [#allocation4], 1
    %262 = vsyncpa %s261, 1
    %263 = vsyncpa [#allocation7], 1
    %s264 = scalar_lea.sflag [#allocation7], 1
    %265 = vsyncpa %s264, 1
    %266 = vsyncpa [#allocation5], 1
    %s267 = scalar_lea.sflag [#allocation5], 1
    %268 = vsyncpa %s267, 1

</llo_original>
